<compile_context>
chip_gen: v7x
topology: tpu7x:2x2x1
jax: 0.10.0
libtpu: 0.0.40
codegen_flags: <defaults>
</compile_context>

<pallas_src>
import functools
import math

import jax
import jax.numpy as jnp
from jax.experimental import pallas as pl
from jax.experimental.pallas import tpu as pltpu

# ---- SNN / LIF hyper-parameters (matterhorn defaults) -----------------------
TAU_M = 2.0        # membrane time constant
U_THRESHOLD = 1.0  # firing threshold
U_REST = 0.0       # resting potential
U_RESET = 0.0      # hard-reset potential (matterhorn hard reset -> u_rest)


def _container_kernel(x_ref, w_ref, b_ref, o_ref, *, time_steps):
    """Single-invocation kernel: hoisted matmul + LIF recurrence + rate decode.

    x_ref : (B, N_in)    f32  flattened (direct-encoded) input
    w_ref : (N_in, N_out) bf16 synapse weight (pre-cast, static parameter)
    b_ref : (1, N_out)   f32  synapse bias
    o_ref : (B, N_out)   f32  decoded output (average spike rate over T)
    """
    # --- synapse (time-invariant under direct encoding): one MXU matmul ---
    # In-kernel bf16 cast of x: VPU op, no extra HBM traffic / XLA op.
    x_bf16 = x_ref[...].astype(jnp.bfloat16)
    current = jnp.dot(x_bf16, w_ref[...], preferred_element_type=jnp.float32)
    current = current + b_ref[...]                     # (B, N_out), f32

    # --- LIF constants (U_REST == 0 simplification) ---
    decay = jnp.float32(1.0 - 1.0 / TAU_M)
    cur_scaled = current * jnp.float32(1.0 / TAU_M)    # hoisted out of the loop

    def step(_, carry):
        u, acc = carry
        u_new = decay * u + cur_scaled                 # 1 mul + 1 add per step
        fired = u_new >= jnp.float32(U_THRESHOLD)
        acc = acc + fired.astype(jnp.float32)
        u = jnp.where(fired, jnp.float32(U_RESET), u_new)
        return (u, acc)

    u0 = jnp.full(current.shape, jnp.float32(U_REST))
    acc0 = jnp.zeros(current.shape, jnp.float32)
    # Capped unroll: full LLO visibility at small T, no code-size blowup at
    # large T (the body is a handful of single-vreg VALU ops).
    _, acc = jax.lax.fori_loop(0, time_steps, step, (u0, acc0),
                               unroll=min(int(time_steps), 8))

    # --- decoder: average spike rate over time ---
    o_ref[...] = acc * jnp.float32(1.0 / time_steps)


def prepare_snn_params(weight, bias):
    """One-time parameter prep — OUTSIDE the per-call path.

    weight : (N_in, N_out) -> bf16 (halves weight DMA bytes; MXU-native input)
    bias   : (N_out,)      -> (1, N_out) f32 row for sublane broadcast
    """
    w_bf16 = jnp.asarray(weight, jnp.bfloat16)
    b_row = jnp.asarray(bias, jnp.float32).reshape(1, -1)
    return w_bf16, b_row


def container_forward(x_nchw, w_bf16, b_row, time_steps):
    """Full Container.forward: encoder -> snn_model -> decoder.

    x_nchw : (B, C, H, W) float32
    w_bf16 : (N_in, N_out) bfloat16   (from prepare_snn_params)
    b_row  : (1, N_out) float32       (from prepare_snn_params)
    returns: (B, N_out) float32       (average firing rate over T)
    """
    B = x_nchw.shape[0]
    n_in = math.prod(x_nchw.shape[1:])
    n_out = w_bf16.shape[1]

    # Encoder (glue): flatten only — metadata-level reshape, no HBM round trip.
    # Direct encoding means the per-step input is identical, so no [T, B, N_in]
    # sequence is ever materialized.
    x_flat = x_nchw.reshape(B, n_in)

    kernel = functools.partial(_container_kernel, time_steps=time_steps)

    # Whole-array VMEM residency: no grid, no padding, natural shapes.
    # (block shape == full array shape is exempt from the (8,128) rule.)
    return pl.pallas_call(
        kernel,
        out_shape=jax.ShapeDtypeStruct((B, n_out), jnp.float32),
        in_specs=[
            pl.BlockSpec(memory_space=pltpu.MemorySpace.VMEM),  # x
            pl.BlockSpec(memory_space=pltpu.MemorySpace.VMEM),  # weight (bf16)
            pl.BlockSpec(memory_space=pltpu.MemorySpace.VMEM),  # bias
        ],
        out_specs=pl.BlockSpec(memory_space=pltpu.MemorySpace.VMEM),
    )(x_flat, w_bf16, b_row)


def _reference_forward(x_nchw, w_bf16, b_row, time_steps):
    """Pure-JAX reference with the same numerics (bf16 matmul inputs, f32
    accumulation, f32 LIF) so the comparison is tight.  Semantics are the
    standard matterhorn LIF update u <- u + (1/tau)*((u_rest - u) + I),
    heaviside spike at u_threshold, hard reset to u_reset, rate decode."""
    B = x_nchw.shape[0]
    x_flat = x_nchw.reshape(B, -1)
    current = jnp.dot(x_flat.astype(jnp.bfloat16), w_bf16,
                      preferred_element_type=jnp.float32) + b_row
    decay = jnp.float32(1.0 - 1.0 / TAU_M)
    cur_scaled = current * jnp.float32(1.0 / TAU_M)
    u = jnp.full_like(current, jnp.float32(U_REST))
    acc = jnp.zeros_like(current)
    for _ in range(time_steps):
        u = decay * u + cur_scaled
        spike = (u >= jnp.float32(U_THRESHOLD)).astype(jnp.float32)
        acc = acc + spike
        u = jnp.where(spike > 0.0, jnp.float32(U_RESET), u)
    return acc / jnp.float32(time_steps)


if __name__ == "__main__":
    key = jax.random.PRNGKey(0)
    k_x, k_w, k_b = jax.random.split(key, 3)

    # Small shapes consistent with the module: NCHW image input, T time steps.
    B, C, H, W = 2, 4, 16, 16
    T = 8
    N_IN = C * H * W          # 1024
    N_OUT = 32                # hidden/output units

    x = jax.random.uniform(k_x, (B, C, H, W), jnp.float32)

    # Deterministic PyTorch-Linear-style init: U(-1/sqrt(fan_in), 1/sqrt(fan_in))
    bound = 1.0 / jnp.sqrt(jnp.float32(N_IN))
    weight = jax.random.uniform(k_w, (N_IN, N_OUT), jnp.float32, -bound, bound)
    bias = jax.random.uniform(k_b, (N_OUT,), jnp.float32, -bound, bound)

    # One-time parameter prep (outside the per-call path).
    w_bf16, b_row = prepare_snn_params(weight, bias)

    out = container_forward(x, w_bf16, b_row, T)
    out = jax.block_until_ready(out)

    ref = _reference_forward(x, w_bf16, b_row, T)
    assert out.shape == (B, N_OUT)
    assert jnp.allclose(out, ref, atol=1e-5, rtol=1e-5), (
        f"max abs diff = {jnp.max(jnp.abs(out - ref))}")

    print("KERNEL_OK")
</pallas_src>

<mosaic_0001>
module attributes {stable_mosaic.version = 11 : i64} {
  func.func @_container_kernel(%arg0: memref<2x1024xf32, #tpu.memory_space<vmem>>, %arg1: memref<1024x32xbf16, #tpu.memory_space<vmem>>, %arg2: memref<1x32xf32, #tpu.memory_space<vmem>>, %arg3: memref<2x32xf32, #tpu.memory_space<vmem>>) attributes {dimension_semantics = [], scalar_prefetch = 0 : i64, scratch_operands = 0 : i64, tpu.core_type = #tpu.core_type<tc>} {
    %c0 = arith.constant 0 : index
    %c0_0 = arith.constant 0 : index
    %0 = vector.load %arg0[%c0, %c0_0] : memref<2x1024xf32, #tpu.memory_space<vmem>>, vector<2x1024xf32>
    %1 = arith.truncf %0 : vector<2x1024xf32> to vector<2x1024xbf16>
    %c0_1 = arith.constant 0 : index
    %c0_2 = arith.constant 0 : index
    %2 = vector.load %arg1[%c0_1, %c0_2] : memref<1024x32xbf16, #tpu.memory_space<vmem>>, vector<1024x32xbf16>
    %cst = arith.constant dense<0.000000e+00> : vector<2x32xf32>
    %3 = tpu.matmul %1, %2, %cst {dimension_numbers = #tpu.dot_dimension_numbers<[1], [0], [0], [1], [0, 0, 1, 1], [], []>} : vector<2x1024xbf16>, vector<1024x32xbf16>, vector<2x32xf32> -> vector<2x32xf32>
    %c0_3 = arith.constant 0 : index
    %c0_4 = arith.constant 0 : index
    %4 = vector.load %arg2[%c0_3, %c0_4] : memref<1x32xf32, #tpu.memory_space<vmem>>, vector<1x32xf32>
    %5 = vector.broadcast %4 : vector<1x32xf32> to vector<2x32xf32>
    %6 = arith.addf %3, %5 : vector<2x32xf32>
    %cst_5 = arith.constant 5.000000e-01 : f32
    %7 = vector.broadcast %cst_5 : f32 to vector<2x32xf32>
    %8 = arith.mulf %6, %7 : vector<2x32xf32>
    %cst_6 = arith.constant 0.000000e+00 : f32
    %9 = vector.broadcast %cst_6 : f32 to vector<2x32xf32>
    %cst_7 = arith.constant 0.000000e+00 : f32
    %10 = vector.broadcast %cst_7 : f32 to vector<2x32xf32>
    %cst_8 = arith.constant 5.000000e-01 : f32
    %c0_i32 = arith.constant 0 : i32
    %11 = vector.broadcast %cst_8 : f32 to vector<2x32xf32>
    %12 = arith.mulf %11, %9 : vector<2x32xf32>
    %13 = arith.addf %12, %8 : vector<2x32xf32>
    %cst_9 = arith.constant 1.000000e+00 : f32
    %14 = vector.broadcast %cst_9 : f32 to vector<2x32xf32>
    %15 = arith.cmpf oge, %13, %14 : vector<2x32xf32>
    %16 = arith.extui %15 : vector<2x32xi1> to vector<2x32xi32>
    %17 = arith.sitofp %16 : vector<2x32xi32> to vector<2x32xf32>
    %18 = arith.addf %10, %17 : vector<2x32xf32>
    %cst_10 = arith.constant 0.000000e+00 : f32
    %19 = vector.broadcast %cst_10 : f32 to vector<2x32xf32>
    %20 = arith.select %15, %19, %13 : vector<2x32xi1>, vector<2x32xf32>
    %c1_i32 = arith.constant 1 : i32
    %21 = vector.broadcast %cst_8 : f32 to vector<2x32xf32>
    %22 = arith.mulf %21, %20 : vector<2x32xf32>
    %23 = arith.addf %22, %8 : vector<2x32xf32>
    %cst_11 = arith.constant 1.000000e+00 : f32
    %24 = vector.broadcast %cst_11 : f32 to vector<2x32xf32>
    %25 = arith.cmpf oge, %23, %24 : vector<2x32xf32>
    %26 = arith.extui %25 : vector<2x32xi1> to vector<2x32xi32>
    %27 = arith.sitofp %26 : vector<2x32xi32> to vector<2x32xf32>
    %28 = arith.addf %18, %27 : vector<2x32xf32>
    %cst_12 = arith.constant 0.000000e+00 : f32
    %29 = vector.broadcast %cst_12 : f32 to vector<2x32xf32>
    %30 = arith.select %25, %29, %23 : vector<2x32xi1>, vector<2x32xf32>
    %c2_i32 = arith.constant 2 : i32
    %31 = vector.broadcast %cst_8 : f32 to vector<2x32xf32>
    %32 = arith.mulf %31, %30 : vector<2x32xf32>
    %33 = arith.addf %32, %8 : vector<2x32xf32>
    %cst_13 = arith.constant 1.000000e+00 : f32
    %34 = vector.broadcast %cst_13 : f32 to vector<2x32xf32>
    %35 = arith.cmpf oge, %33, %34 : vector<2x32xf32>
    %36 = arith.extui %35 : vector<2x32xi1> to vector<2x32xi32>
    %37 = arith.sitofp %36 : vector<2x32xi32> to vector<2x32xf32>
    %38 = arith.addf %28, %37 : vector<2x32xf32>
    %cst_14 = arith.constant 0.000000e+00 : f32
    %39 = vector.broadcast %cst_14 : f32 to vector<2x32xf32>
    %40 = arith.select %35, %39, %33 : vector<2x32xi1>, vector<2x32xf32>
    %c3_i32 = arith.constant 3 : i32
    %41 = vector.broadcast %cst_8 : f32 to vector<2x32xf32>
    %42 = arith.mulf %41, %40 : vector<2x32xf32>
    %43 = arith.addf %42, %8 : vector<2x32xf32>
    %cst_15 = arith.constant 1.000000e+00 : f32
    %44 = vector.broadcast %cst_15 : f32 to vector<2x32xf32>
    %45 = arith.cmpf oge, %43, %44 : vector<2x32xf32>
    %46 = arith.extui %45 : vector<2x32xi1> to vector<2x32xi32>
    %47 = arith.sitofp %46 : vector<2x32xi32> to vector<2x32xf32>
    %48 = arith.addf %38, %47 : vector<2x32xf32>
    %cst_16 = arith.constant 0.000000e+00 : f32
    %49 = vector.broadcast %cst_16 : f32 to vector<2x32xf32>
    %50 = arith.select %45, %49, %43 : vector<2x32xi1>, vector<2x32xf32>
    %c4_i32 = arith.constant 4 : i32
    %51 = vector.broadcast %cst_8 : f32 to vector<2x32xf32>
    %52 = arith.mulf %51, %50 : vector<2x32xf32>
    %53 = arith.addf %52, %8 : vector<2x32xf32>
    %cst_17 = arith.constant 1.000000e+00 : f32
    %54 = vector.broadcast %cst_17 : f32 to vector<2x32xf32>
    %55 = arith.cmpf oge, %53, %54 : vector<2x32xf32>
    %56 = arith.extui %55 : vector<2x32xi1> to vector<2x32xi32>
    %57 = arith.sitofp %56 : vector<2x32xi32> to vector<2x32xf32>
    %58 = arith.addf %48, %57 : vector<2x32xf32>
    %cst_18 = arith.constant 0.000000e+00 : f32
    %59 = vector.broadcast %cst_18 : f32 to vector<2x32xf32>
    %60 = arith.select %55, %59, %53 : vector<2x32xi1>, vector<2x32xf32>
    %c5_i32 = arith.constant 5 : i32
    %61 = vector.broadcast %cst_8 : f32 to vector<2x32xf32>
    %62 = arith.mulf %61, %60 : vector<2x32xf32>
    %63 = arith.addf %62, %8 : vector<2x32xf32>
    %cst_19 = arith.constant 1.000000e+00 : f32
    %64 = vector.broadcast %cst_19 : f32 to vector<2x32xf32>
    %65 = arith.cmpf oge, %63, %64 : vector<2x32xf32>
    %66 = arith.extui %65 : vector<2x32xi1> to vector<2x32xi32>
    %67 = arith.sitofp %66 : vector<2x32xi32> to vector<2x32xf32>
    %68 = arith.addf %58, %67 : vector<2x32xf32>
    %cst_20 = arith.constant 0.000000e+00 : f32
    %69 = vector.broadcast %cst_20 : f32 to vector<2x32xf32>
    %70 = arith.select %65, %69, %63 : vector<2x32xi1>, vector<2x32xf32>
    %c6_i32 = arith.constant 6 : i32
    %71 = vector.broadcast %cst_8 : f32 to vector<2x32xf32>
    %72 = arith.mulf %71, %70 : vector<2x32xf32>
    %73 = arith.addf %72, %8 : vector<2x32xf32>
    %cst_21 = arith.constant 1.000000e+00 : f32
    %74 = vector.broadcast %cst_21 : f32 to vector<2x32xf32>
    %75 = arith.cmpf oge, %73, %74 : vector<2x32xf32>
    %76 = arith.extui %75 : vector<2x32xi1> to vector<2x32xi32>
    %77 = arith.sitofp %76 : vector<2x32xi32> to vector<2x32xf32>
    %78 = arith.addf %68, %77 : vector<2x32xf32>
    %cst_22 = arith.constant 0.000000e+00 : f32
    %79 = vector.broadcast %cst_22 : f32 to vector<2x32xf32>
    %80 = arith.select %75, %79, %73 : vector<2x32xi1>, vector<2x32xf32>
    %c7_i32 = arith.constant 7 : i32
    %81 = vector.broadcast %cst_8 : f32 to vector<2x32xf32>
    %82 = arith.mulf %81, %80 : vector<2x32xf32>
    %83 = arith.addf %82, %8 : vector<2x32xf32>
    %cst_23 = arith.constant 1.000000e+00 : f32
    %84 = vector.broadcast %cst_23 : f32 to vector<2x32xf32>
    %85 = arith.cmpf oge, %83, %84 : vector<2x32xf32>
    %86 = arith.extui %85 : vector<2x32xi1> to vector<2x32xi32>
    %87 = arith.sitofp %86 : vector<2x32xi32> to vector<2x32xf32>
    %88 = arith.addf %78, %87 : vector<2x32xf32>
    %cst_24 = arith.constant 0.000000e+00 : f32
    %89 = vector.broadcast %cst_24 : f32 to vector<2x32xf32>
    %90 = arith.select %85, %89, %83 : vector<2x32xi1>, vector<2x32xf32>
    %cst_25 = arith.constant 1.250000e-01 : f32
    %91 = vector.broadcast %cst_25 : f32 to vector<2x32xf32>
    %92 = arith.mulf %88, %91 : vector<2x32xf32>
    %c0_26 = arith.constant 0 : index
    %c0_27 = arith.constant 0 : index
    %93 = vector.load %arg3[%c0_26, %c0_27] : memref<2x32xf32, #tpu.memory_space<vmem>>, vector<2x32xf32>
    tpu.vector_store %arg3[%c0_26, %c0_27], %92 {strides = array<i32>} : memref<2x32xf32, #tpu.memory_space<vmem>>, vector<2x32xf32>,
    return
  }
}

</mosaic_0001>

<llo_original>
// kernel: tpu_custom_call.1
$region0: #{tpu_custom_call.1}
  #allocation0 [shape = 'u32[]', space=smem, size = 0x4, offset = 0x4, fixed_abs, tag = 'smem constant byte address 0x4 - core index']
  #allocation1 [shape = 'u32[144,128]{1,0:T(1,128)}', space=vmem, size = 0x12000, scoped, tag = 'internal scratch']
  %s0 = inlined_call_operand.vmem [shape: f32[2,1024], index: 0, kind: input, shape index: {}]
  %s1 = inlined_call_operand.vmem [shape: bf16[1024,32], index: 1, kind: input, shape index: {}]
  %s2 = inlined_call_operand.vmem [shape: f32[1,32], index: 2, kind: input, shape index: {}]
  %s3 = inlined_call_operand.hbm [shape: f32[2,32], index: 3, kind: output, shape index: {}]
  %s4 = sld [smem:[#allocation0]]
  $region22: #{tpu_custom_call.1} parent=0
    _
  %s6 = ssub.s32 1, %s4
  %s7 = scalar_select 0, %s6, %s4
  $region1: #{tpu_custom_call.1} parent=0
    #allocation2 [shape = 'u8[1024]{0}', space=vmem, size = 0x400, scoped, tag = 'output window, operand 0, single buffered']
    #allocation3 [shape = 's32[1]{0}', space=sflag, size = 0x4, scoped, tag = 'scoped memory for tpu_custom_call.1']
    %8 = vsyncpa [#allocation3], 0
    // Predicated region
    $region2: #{tpu_custom_call.1} parent=1 // pred_check
      _
    $region3: #{tpu_custom_call.1} parent=1 // pred_check_branch
      %10 = sbr.rel (0) target = $region5
    $region4: #{tpu_custom_call.1} parent=1 // pred_region
      _
    $region5: #{tpu_custom_call.1} parent=1 // pred_fallthru
      _
    // Predicated region
    $region6: #{tpu_custom_call.1} parent=1 // pred_check
      _
    $region7: #{tpu_custom_call.1} parent=1 // pred_check_branch
      %12 = sbr.rel (0) target = $region9
    $region8: #{tpu_custom_call.1} parent=1 // pred_region
      _
    $region9: #{tpu_custom_call.1} parent=1 // pred_fallthru
      _
    // Predicated region
    $region10: #{tpu_custom_call.1} parent=1 // pred_check
      _
    $region11: #{tpu_custom_call.1} parent=1 // pred_check_branch
      %14 = sbr.rel (0) target = $region13
    $region12: #{tpu_custom_call.1} parent=1 // pred_region
      _
    $region13: #{tpu_custom_call.1} parent=1 // pred_fallthru
      _
    %v16 = vld [vmem:[%s0] sm:$0xff]
    %v17 = vld [vmem:[%s0 + $0x8] sm:$0xff]
    %v20 = vcombine.high %v16, %v16
    %v22 = vunpack.c.l.s4 1983009808
    %v23 = vunpack.c.0.s8 %v22
    %v24 = vlaneseq
    %v25 = vshrl.u32 %v24, 7
    %v26 = vsub.s32 %v23, %v25
    %v27 = vrot.slane %v16, %v26
    %v29 = vunpack.c.l.s4 1983009808
    %v30 = vunpack.c.0.s8 %v29
    %v31 = vlaneseq
    %v32 = vshrl.u32 %v31, 7
    %v33 = vsub.s32 %v30, %v32
    %v34 = vrot.slane %v20, %v33
    %v35 = vcombine.high %v27, %v27
    %v36 = vcombine.high %v34, %v34
    %v37 = vcombine.high %v17, %v17
    %v39 = vunpack.c.l.s4 1983009808
    %v40 = vunpack.c.0.s8 %v39
    %v41 = vlaneseq
    %v42 = vshrl.u32 %v41, 7
    %v43 = vsub.s32 %v40, %v42
    %v44 = vrot.slane %v17, %v43
    %v46 = vunpack.c.l.s4 1983009808
    %v47 = vunpack.c.0.s8 %v46
    %v48 = vlaneseq
    %v49 = vshrl.u32 %v48, 7
    %v50 = vsub.s32 %v47, %v49
    %v51 = vrot.slane %v37, %v50
    %v52 = vcombine.high %v44, %v44
    %v53 = vcombine.high %v51, %v51
    %v62 = vpack.c.bf16 %v27, %v27
    %v63 = vpack.c.bf16 %v35, %v35
    %v64 = vpack.c.bf16 %v34, %v34
    %v65 = vpack.c.bf16 %v36, %v36
    %v66 = vpack.c.bf16 %v44, %v44
    %v67 = vpack.c.bf16 %v52, %v52
    %v68 = vpack.c.bf16 %v51, %v51
    %v69 = vpack.c.bf16 %v53, %v53
    %v70 = vld [vmem:[%s1] sm:$0xf]
    %v71 = vld [vmem:[%s1 + $0x4] sm:$0xf]
    %v72 = vld [vmem:[%s1 + $0x8] sm:$0xf]
    %v73 = vld [vmem:[%s1 + $0xc] sm:$0xf]
    %v74 = vld [vmem:[%s1 + $0x10] sm:$0xf]
    %v75 = vld [vmem:[%s1 + $0x14] sm:$0xf]
    %v76 = vld [vmem:[%s1 + $0x18] sm:$0xf]
    %v77 = vld [vmem:[%s1 + $0x1c] sm:$0xf]
    %v78 = vld [vmem:[%s1 + $0x20] sm:$0xf]
    %v79 = vld [vmem:[%s1 + $0x24] sm:$0xf]
    %v80 = vld [vmem:[%s1 + $0x28] sm:$0xf]
    %v81 = vld [vmem:[%s1 + $0x2c] sm:$0xf]
    %v82 = vld [vmem:[%s1 + $0x30] sm:$0xf]
    %v83 = vld [vmem:[%s1 + $0x34] sm:$0xf]
    %v84 = vld [vmem:[%s1 + $0x38] sm:$0xf]
    %v85 = vld [vmem:[%s1 + $0x3c] sm:$0xf]
    %v86 = vld [vmem:[%s1 + $0x40] sm:$0xf]
    %v87 = vld [vmem:[%s1 + $0x44] sm:$0xf]
    %v88 = vld [vmem:[%s1 + $0x48] sm:$0xf]
    %v89 = vld [vmem:[%s1 + $0x4c] sm:$0xf]
    %v90 = vld [vmem:[%s1 + $0x50] sm:$0xf]
    %v91 = vld [vmem:[%s1 + $0x54] sm:$0xf]
    %v92 = vld [vmem:[%s1 + $0x58] sm:$0xf]
    %v93 = vld [vmem:[%s1 + $0x5c] sm:$0xf]
    %v94 = vld [vmem:[%s1 + $0x60] sm:$0xf]
    %v95 = vld [vmem:[%s1 + $0x64] sm:$0xf]
    %v96 = vld [vmem:[%s1 + $0x68] sm:$0xf]
    %v97 = vld [vmem:[%s1 + $0x6c] sm:$0xf]
    %v98 = vld [vmem:[%s1 + $0x70] sm:$0xf]
    %v99 = vld [vmem:[%s1 + $0x74] sm:$0xf]
    %v100 = vld [vmem:[%s1 + $0x78] sm:$0xf]
    %v101 = vld [vmem:[%s1 + $0x7c] sm:$0xf]
    %v102 = vld [vmem:[%s1 + $0x80] sm:$0xf]
    %v103 = vld [vmem:[%s1 + $0x84] sm:$0xf]
    %v104 = vld [vmem:[%s1 + $0x88] sm:$0xf]
    %v105 = vld [vmem:[%s1 + $0x8c] sm:$0xf]
    %v106 = vld [vmem:[%s1 + $0x90] sm:$0xf]
    %v107 = vld [vmem:[%s1 + $0x94] sm:$0xf]
    %v108 = vld [vmem:[%s1 + $0x98] sm:$0xf]
    %v109 = vld [vmem:[%s1 + $0x9c] sm:$0xf]
    %v110 = vld [vmem:[%s1 + $0xa0] sm:$0xf]
    %v111 = vld [vmem:[%s1 + $0xa4] sm:$0xf]
    %v112 = vld [vmem:[%s1 + $0xa8] sm:$0xf]
    %v113 = vld [vmem:[%s1 + $0xac] sm:$0xf]
    %v114 = vld [vmem:[%s1 + $0xb0] sm:$0xf]
    %v115 = vld [vmem:[%s1 + $0xb4] sm:$0xf]
    %v116 = vld [vmem:[%s1 + $0xb8] sm:$0xf]
    %v117 = vld [vmem:[%s1 + $0xbc] sm:$0xf]
    %v118 = vld [vmem:[%s1 + $0xc0] sm:$0xf]
    %v119 = vld [vmem:[%s1 + $0xc4] sm:$0xf]
    %v120 = vld [vmem:[%s1 + $0xc8] sm:$0xf]
    %v121 = vld [vmem:[%s1 + $0xcc] sm:$0xf]
    %v122 = vld [vmem:[%s1 + $0xd0] sm:$0xf]
    %v123 = vld [vmem:[%s1 + $0xd4] sm:$0xf]
    %v124 = vld [vmem:[%s1 + $0xd8] sm:$0xf]
    %v125 = vld [vmem:[%s1 + $0xdc] sm:$0xf]
    %v126 = vld [vmem:[%s1 + $0xe0] sm:$0xf]
    %v127 = vld [vmem:[%s1 + $0xe4] sm:$0xf]
    %v128 = vld [vmem:[%s1 + $0xe8] sm:$0xf]
    %v129 = vld [vmem:[%s1 + $0xec] sm:$0xf]
    %v130 = vld [vmem:[%s1 + $0xf0] sm:$0xf]
    %v131 = vld [vmem:[%s1 + $0xf4] sm:$0xf]
    %v132 = vld [vmem:[%s1 + $0xf8] sm:$0xf]
    %v133 = vld [vmem:[%s1 + $0xfc] sm:$0xf]
    %v134 = vld [vmem:[%s1 + $0x100] sm:$0xf]
    %v135 = vld [vmem:[%s1 + $0x104] sm:$0xf]
    %v136 = vld [vmem:[%s1 + $0x108] sm:$0xf]
    %v137 = vld [vmem:[%s1 + $0x10c] sm:$0xf]
    %v138 = vld [vmem:[%s1 + $0x110] sm:$0xf]
    %v139 = vld [vmem:[%s1 + $0x114] sm:$0xf]
    %v140 = vld [vmem:[%s1 + $0x118] sm:$0xf]
    %v141 = vld [vmem:[%s1 + $0x11c] sm:$0xf]
    %v142 = vld [vmem:[%s1 + $0x120] sm:$0xf]
    %v143 = vld [vmem:[%s1 + $0x124] sm:$0xf]
    %v144 = vld [vmem:[%s1 + $0x128] sm:$0xf]
    %v145 = vld [vmem:[%s1 + $0x12c] sm:$0xf]
    %v146 = vld [vmem:[%s1 + $0x130] sm:$0xf]
    %v147 = vld [vmem:[%s1 + $0x134] sm:$0xf]
    %v148 = vld [vmem:[%s1 + $0x138] sm:$0xf]
    %v149 = vld [vmem:[%s1 + $0x13c] sm:$0xf]
    %v150 = vld [vmem:[%s1 + $0x140] sm:$0xf]
    %v151 = vld [vmem:[%s1 + $0x144] sm:$0xf]
    %v152 = vld [vmem:[%s1 + $0x148] sm:$0xf]
    %v153 = vld [vmem:[%s1 + $0x14c] sm:$0xf]
    %v154 = vld [vmem:[%s1 + $0x150] sm:$0xf]
    %v155 = vld [vmem:[%s1 + $0x154] sm:$0xf]
    %v156 = vld [vmem:[%s1 + $0x158] sm:$0xf]
    %v157 = vld [vmem:[%s1 + $0x15c] sm:$0xf]
    %v158 = vld [vmem:[%s1 + $0x160] sm:$0xf]
    %v159 = vld [vmem:[%s1 + $0x164] sm:$0xf]
    %v160 = vld [vmem:[%s1 + $0x168] sm:$0xf]
    %v161 = vld [vmem:[%s1 + $0x16c] sm:$0xf]
    %v162 = vld [vmem:[%s1 + $0x170] sm:$0xf]
    %v163 = vld [vmem:[%s1 + $0x174] sm:$0xf]
    %v164 = vld [vmem:[%s1 + $0x178] sm:$0xf]
    %v165 = vld [vmem:[%s1 + $0x17c] sm:$0xf]
    %v166 = vld [vmem:[%s1 + $0x180] sm:$0xf]
    %v167 = vld [vmem:[%s1 + $0x184] sm:$0xf]
    %v168 = vld [vmem:[%s1 + $0x188] sm:$0xf]
    %v169 = vld [vmem:[%s1 + $0x18c] sm:$0xf]
    %v170 = vld [vmem:[%s1 + $0x190] sm:$0xf]
    %v171 = vld [vmem:[%s1 + $0x194] sm:$0xf]
    %v172 = vld [vmem:[%s1 + $0x198] sm:$0xf]
    %v173 = vld [vmem:[%s1 + $0x19c] sm:$0xf]
    %v174 = vld [vmem:[%s1 + $0x1a0] sm:$0xf]
    %v175 = vld [vmem:[%s1 + $0x1a4] sm:$0xf]
    %v176 = vld [vmem:[%s1 + $0x1a8] sm:$0xf]
    %v177 = vld [vmem:[%s1 + $0x1ac] sm:$0xf]
    %v178 = vld [vmem:[%s1 + $0x1b0] sm:$0xf]
    %v179 = vld [vmem:[%s1 + $0x1b4] sm:$0xf]
    %v180 = vld [vmem:[%s1 + $0x1b8] sm:$0xf]
    %v181 = vld [vmem:[%s1 + $0x1bc] sm:$0xf]
    %v182 = vld [vmem:[%s1 + $0x1c0] sm:$0xf]
    %v183 = vld [vmem:[%s1 + $0x1c4] sm:$0xf]
    %v184 = vld [vmem:[%s1 + $0x1c8] sm:$0xf]
    %v185 = vld [vmem:[%s1 + $0x1cc] sm:$0xf]
    %v186 = vld [vmem:[%s1 + $0x1d0] sm:$0xf]
    %v187 = vld [vmem:[%s1 + $0x1d4] sm:$0xf]
    %v188 = vld [vmem:[%s1 + $0x1d8] sm:$0xf]
    %v189 = vld [vmem:[%s1 + $0x1dc] sm:$0xf]
    %v190 = vld [vmem:[%s1 + $0x1e0] sm:$0xf]
    %v191 = vld [vmem:[%s1 + $0x1e4] sm:$0xf]
    %v192 = vld [vmem:[%s1 + $0x1e8] sm:$0xf]
    %v193 = vld [vmem:[%s1 + $0x1ec] sm:$0xf]
    %v194 = vld [vmem:[%s1 + $0x1f0] sm:$0xf]
    %v195 = vld [vmem:[%s1 + $0x1f4] sm:$0xf]
    %v196 = vld [vmem:[%s1 + $0x1f8] sm:$0xf]
    %v197 = vld [vmem:[%s1 + $0x1fc] sm:$0xf]
    %v198 = vld [vmem:[%s2] sm:$0x1]
    %v200 = vlaneseq
    %v201 = vshrl.u32 %v200, 7
    %v202 = vsub.s32 0, %v201
    %v203 = vrot.slane %v198, %v202
    %v333 = vunpack.c.l.b16 %v70
    %v334 = vunpack.c.l.b16 %v71
    %v335 = vunpack.c.l.b16 %v72
    %v336 = vunpack.c.l.b16 %v73
    %v337 = vunpack.c.l.b16 %v74
    %v338 = vunpack.c.l.b16 %v75
    %v339 = vunpack.c.l.b16 %v76
    %v340 = vunpack.c.l.b16 %v77
    %v341 = vunpack.c.l.b16 %v78
    %v342 = vunpack.c.l.b16 %v79
    %v343 = vunpack.c.l.b16 %v80
    %v344 = vunpack.c.l.b16 %v81
    %v345 = vunpack.c.l.b16 %v82
    %v346 = vunpack.c.l.b16 %v83
    %v347 = vunpack.c.l.b16 %v84
    %v348 = vunpack.c.l.b16 %v85
    %v349 = vunpack.c.l.b16 %v86
    %v350 = vunpack.c.l.b16 %v87
    %v351 = vunpack.c.l.b16 %v88
    %v352 = vunpack.c.l.b16 %v89
    %v353 = vunpack.c.l.b16 %v90
    %v354 = vunpack.c.l.b16 %v91
    %v355 = vunpack.c.l.b16 %v92
    %v356 = vunpack.c.l.b16 %v93
    %v357 = vunpack.c.l.b16 %v94
    %v358 = vunpack.c.l.b16 %v95
    %v359 = vunpack.c.l.b16 %v96
    %v360 = vunpack.c.l.b16 %v97
    %v361 = vunpack.c.l.b16 %v98
    %v362 = vunpack.c.l.b16 %v99
    %v363 = vunpack.c.l.b16 %v100
    %v364 = vunpack.c.l.b16 %v101
    %v365 = vunpack.c.l.b16 %v102
    %v366 = vunpack.c.l.b16 %v103
    %v367 = vunpack.c.l.b16 %v104
    %v368 = vunpack.c.l.b16 %v105
    %v369 = vunpack.c.l.b16 %v106
    %v370 = vunpack.c.l.b16 %v107
    %v371 = vunpack.c.l.b16 %v108
    %v372 = vunpack.c.l.b16 %v109
    %v373 = vunpack.c.l.b16 %v110
    %v374 = vunpack.c.l.b16 %v111
    %v375 = vunpack.c.l.b16 %v112
    %v376 = vunpack.c.l.b16 %v113
    %v377 = vunpack.c.l.b16 %v114
    %v378 = vunpack.c.l.b16 %v115
    %v379 = vunpack.c.l.b16 %v116
    %v380 = vunpack.c.l.b16 %v117
    %v381 = vunpack.c.l.b16 %v118
    %v382 = vunpack.c.l.b16 %v119
    %v383 = vunpack.c.l.b16 %v120
    %v384 = vunpack.c.l.b16 %v121
    %v385 = vunpack.c.l.b16 %v122
    %v386 = vunpack.c.l.b16 %v123
    %v387 = vunpack.c.l.b16 %v124
    %v388 = vunpack.c.l.b16 %v125
    %v389 = vunpack.c.l.b16 %v126
    %v390 = vunpack.c.l.b16 %v127
    %v391 = vunpack.c.l.b16 %v128
    %v392 = vunpack.c.l.b16 %v129
    %v393 = vunpack.c.l.b16 %v130
    %v394 = vunpack.c.l.b16 %v131
    %v395 = vunpack.c.l.b16 %v132
    %v396 = vunpack.c.l.b16 %v133
    %v397 = vunpack.c.l.b16 %v134
    %v398 = vunpack.c.l.b16 %v135
    %v399 = vunpack.c.l.b16 %v136
    %v400 = vunpack.c.l.b16 %v137
    %v401 = vunpack.c.l.b16 %v138
    %v402 = vunpack.c.l.b16 %v139
    %v403 = vunpack.c.l.b16 %v140
    %v404 = vunpack.c.l.b16 %v141
    %v405 = vunpack.c.l.b16 %v142
    %v406 = vunpack.c.l.b16 %v143
    %v407 = vunpack.c.l.b16 %v144
    %v408 = vunpack.c.l.b16 %v145
    %v409 = vunpack.c.l.b16 %v146
    %v410 = vunpack.c.l.b16 %v147
    %v411 = vunpack.c.l.b16 %v148
    %v412 = vunpack.c.l.b16 %v149
    %v413 = vunpack.c.l.b16 %v150
    %v414 = vunpack.c.l.b16 %v151
    %v415 = vunpack.c.l.b16 %v152
    %v416 = vunpack.c.l.b16 %v153
    %v417 = vunpack.c.l.b16 %v154
    %v418 = vunpack.c.l.b16 %v155
    %v419 = vunpack.c.l.b16 %v156
    %v420 = vunpack.c.l.b16 %v157
    %v421 = vunpack.c.l.b16 %v158
    %v422 = vunpack.c.l.b16 %v159
    %v423 = vunpack.c.l.b16 %v160
    %v424 = vunpack.c.l.b16 %v161
    %v425 = vunpack.c.l.b16 %v162
    %v426 = vunpack.c.l.b16 %v163
    %v427 = vunpack.c.l.b16 %v164
    %v428 = vunpack.c.l.b16 %v165
    %v429 = vunpack.c.l.b16 %v166
    %v430 = vunpack.c.l.b16 %v167
    %v431 = vunpack.c.l.b16 %v168
    %v432 = vunpack.c.l.b16 %v169
    %v433 = vunpack.c.l.b16 %v170
    %v434 = vunpack.c.l.b16 %v171
    %v435 = vunpack.c.l.b16 %v172
    %v436 = vunpack.c.l.b16 %v173
    %v437 = vunpack.c.l.b16 %v174
    %v438 = vunpack.c.l.b16 %v175
    %v439 = vunpack.c.l.b16 %v176
    %v440 = vunpack.c.l.b16 %v177
    %v441 = vunpack.c.l.b16 %v178
    %v442 = vunpack.c.l.b16 %v179
    %v443 = vunpack.c.l.b16 %v180
    %v444 = vunpack.c.l.b16 %v181
    %v445 = vunpack.c.l.b16 %v182
    %v446 = vunpack.c.l.b16 %v183
    %v447 = vunpack.c.l.b16 %v184
    %v448 = vunpack.c.l.b16 %v185
    %v449 = vunpack.c.l.b16 %v186
    %v450 = vunpack.c.l.b16 %v187
    %v451 = vunpack.c.l.b16 %v188
    %v452 = vunpack.c.l.b16 %v189
    %v453 = vunpack.c.l.b16 %v190
    %v454 = vunpack.c.l.b16 %v191
    %v455 = vunpack.c.l.b16 %v192
    %v456 = vunpack.c.l.b16 %v193
    %v457 = vunpack.c.l.b16 %v194
    %v458 = vunpack.c.l.b16 %v195
    %v459 = vunpack.c.l.b16 %v196
    %v460 = vunpack.c.l.b16 %v197
    %v461 = vpack.c.b16 %v334, %v333
    %v462 = vpack.c.b16 %v336, %v335
    %v463 = vpack.c.b16 %v338, %v337
    %v464 = vpack.c.b16 %v340, %v339
    %v465 = vpack.c.b16 %v342, %v341
    %v466 = vpack.c.b16 %v344, %v343
    %v467 = vpack.c.b16 %v346, %v345
    %v468 = vpack.c.b16 %v348, %v347
    %v469 = vpack.c.b16 %v350, %v349
    %v470 = vpack.c.b16 %v352, %v351
    %v471 = vpack.c.b16 %v354, %v353
    %v472 = vpack.c.b16 %v356, %v355
    %v473 = vpack.c.b16 %v358, %v357
    %v474 = vpack.c.b16 %v360, %v359
    %v475 = vpack.c.b16 %v362, %v361
    %v476 = vpack.c.b16 %v364, %v363
    %v477 = vpack.c.b16 %v366, %v365
    %v478 = vpack.c.b16 %v368, %v367
    %v479 = vpack.c.b16 %v370, %v369
    %v480 = vpack.c.b16 %v372, %v371
    %v481 = vpack.c.b16 %v374, %v373
    %v482 = vpack.c.b16 %v376, %v375
    %v483 = vpack.c.b16 %v378, %v377
    %v484 = vpack.c.b16 %v380, %v379
    %v485 = vpack.c.b16 %v382, %v381
    %v486 = vpack.c.b16 %v384, %v383
    %v487 = vpack.c.b16 %v386, %v385
    %v488 = vpack.c.b16 %v388, %v387
    %v489 = vpack.c.b16 %v390, %v389
    %v490 = vpack.c.b16 %v392, %v391
    %v491 = vpack.c.b16 %v394, %v393
    %v492 = vpack.c.b16 %v396, %v395
    %v493 = vpack.c.b16 %v398, %v397
    %v494 = vpack.c.b16 %v400, %v399
    %v495 = vpack.c.b16 %v402, %v401
    %v496 = vpack.c.b16 %v404, %v403
    %v497 = vpack.c.b16 %v406, %v405
    %v498 = vpack.c.b16 %v408, %v407
    %v499 = vpack.c.b16 %v410, %v409
    %v500 = vpack.c.b16 %v412, %v411
    %v501 = vpack.c.b16 %v414, %v413
    %v502 = vpack.c.b16 %v416, %v415
    %v503 = vpack.c.b16 %v418, %v417
    %v504 = vpack.c.b16 %v420, %v419
    %v505 = vpack.c.b16 %v422, %v421
    %v506 = vpack.c.b16 %v424, %v423
    %v507 = vpack.c.b16 %v426, %v425
    %v508 = vpack.c.b16 %v428, %v427
    %v509 = vpack.c.b16 %v430, %v429
    %v510 = vpack.c.b16 %v432, %v431
    %v511 = vpack.c.b16 %v434, %v433
    %v512 = vpack.c.b16 %v436, %v435
    %v513 = vpack.c.b16 %v438, %v437
    %v514 = vpack.c.b16 %v440, %v439
    %v515 = vpack.c.b16 %v442, %v441
    %v516 = vpack.c.b16 %v444, %v443
    %v517 = vpack.c.b16 %v446, %v445
    %v518 = vpack.c.b16 %v448, %v447
    %v519 = vpack.c.b16 %v450, %v449
    %v520 = vpack.c.b16 %v452, %v451
    %v521 = vpack.c.b16 %v454, %v453
    %v522 = vpack.c.b16 %v456, %v455
    %v523 = vpack.c.b16 %v458, %v457
    %v524 = vpack.c.b16 %v460, %v459
    %589 = vmatprep.subr.bf16.mxu0 0
    %590 = vmatpush1.bf16.msra.mxu0 %v461
    %591 = vmatprep.subr.bf16.mxu0 0
    %592 = vmatpush1.bf16.msra.mxu0 %v462
    %593 = vmatprep.subr.bf16.mxu0 0
    %594 = vmatpush1.bf16.msra.mxu0 %v463
    %595 = vmatprep.subr.bf16.mxu0 0
    %596 = vmatpush1.bf16.msra.mxu0 %v464
    %597 = vmatprep.subr.bf16.mxu0 0
    %598 = vmatpush1.bf16.msra.mxu0 %v465
    %599 = vmatprep.subr.bf16.mxu0 0
    %600 = vmatpush1.bf16.msra.mxu0 %v466
    %601 = vmatprep.subr.bf16.mxu0 0
    %602 = vmatpush1.bf16.msra.mxu0 %v467
    %603 = vmatprep.subr.bf16.mxu0 0
    %604 = vmatpush1.bf16.msra.mxu0 %v468
    %605 = vmatprep.subr.bf16.mxu0 0
    %606 = vmatpush1.bf16.msra.mxu0 %v469
    %607 = vmatprep.subr.bf16.mxu0 0
    %608 = vmatpush1.bf16.msra.mxu0 %v470
    %609 = vmatprep.subr.bf16.mxu0 0
    %610 = vmatpush1.bf16.msra.mxu0 %v471
    %611 = vmatprep.subr.bf16.mxu0 0
    %612 = vmatpush1.bf16.msra.mxu0 %v472
    %613 = vmatprep.subr.bf16.mxu0 0
    %614 = vmatpush1.bf16.msra.mxu0 %v473
    %615 = vmatprep.subr.bf16.mxu0 0
    %616 = vmatpush1.bf16.msra.mxu0 %v474
    %617 = vmatprep.subr.bf16.mxu0 0
    %618 = vmatpush1.bf16.msra.mxu0 %v475
    %619 = vmatprep.subr.bf16.mxu0 0
    %620 = vmatpush1.bf16.msra.mxu0 %v476
    %621 = vmatprep.mubr.bf16.mxu0 %v63
    %622 = vmatmul.mubr.bf16.gmra.mrb[0].mxu0 %v62
    %v623 = vpop.f32.mrb[0].mxu0
    %v624 = vadd.f32 %v203, %v623
    %v625 = vpop.f32.mrb[0].mxu0
    %v626 = vpop.f32.mrb[0].mxu0
    %v627 = vpop.f32.mrb[0].mxu0
    %628 = vdwg.mxu0
    %629 = vmatprep.subr.bf16.mxu0 0
    %630 = vmatpush1.bf16.msra.mxu0 %v477
    %631 = vmatprep.subr.bf16.mxu0 0
    %632 = vmatpush1.bf16.msra.mxu0 %v478
    %633 = vmatprep.subr.bf16.mxu0 0
    %634 = vmatpush1.bf16.msra.mxu0 %v479
    %635 = vmatprep.subr.bf16.mxu0 0
    %636 = vmatpush1.bf16.msra.mxu0 %v480
    %637 = vmatprep.subr.bf16.mxu0 0
    %638 = vmatpush1.bf16.msra.mxu0 %v481
    %639 = vmatprep.subr.bf16.mxu0 0
    %640 = vmatpush1.bf16.msra.mxu0 %v482
    %641 = vmatprep.subr.bf16.mxu0 0
    %642 = vmatpush1.bf16.msra.mxu0 %v483
    %643 = vmatprep.subr.bf16.mxu0 0
    %644 = vmatpush1.bf16.msra.mxu0 %v484
    %645 = vmatprep.subr.bf16.mxu0 0
    %646 = vmatpush1.bf16.msra.mxu0 %v485
    %647 = vmatprep.subr.bf16.mxu0 0
    %648 = vmatpush1.bf16.msra.mxu0 %v486
    %649 = vmatprep.subr.bf16.mxu0 0
    %650 = vmatpush1.bf16.msra.mxu0 %v487
    %651 = vmatprep.subr.bf16.mxu0 0
    %652 = vmatpush1.bf16.msra.mxu0 %v488
    %653 = vmatprep.subr.bf16.mxu0 0
    %654 = vmatpush1.bf16.msra.mxu0 %v489
    %655 = vmatprep.subr.bf16.mxu0 0
    %656 = vmatpush1.bf16.msra.mxu0 %v490
    %657 = vmatprep.subr.bf16.mxu0 0
    %658 = vmatpush1.bf16.msra.mxu0 %v491
    %659 = vmatprep.subr.bf16.mxu0 0
    %660 = vmatpush1.bf16.msra.mxu0 %v492
    %661 = vmatprep.mubr.bf16.mxu0 %v65
    %662 = vmatmul.mubr.bf16.gmra.mrb[0].mxu0 %v64
    %v663 = vpop.f32.mrb[0].mxu0
    %v664 = vadd.f32 %v624, %v663
    %v665 = vpop.f32.mrb[0].mxu0
    %v666 = vpop.f32.mrb[0].mxu0
    %v667 = vpop.f32.mrb[0].mxu0
    %668 = vdwg.mxu0
    %669 = vmatprep.subr.bf16.mxu0 0
    %670 = vmatpush1.bf16.msra.mxu0 %v493
    %671 = vmatprep.subr.bf16.mxu0 0
    %672 = vmatpush1.bf16.msra.mxu0 %v494
    %673 = vmatprep.subr.bf16.mxu0 0
    %674 = vmatpush1.bf16.msra.mxu0 %v495
    %675 = vmatprep.subr.bf16.mxu0 0
    %676 = vmatpush1.bf16.msra.mxu0 %v496
    %677 = vmatprep.subr.bf16.mxu0 0
    %678 = vmatpush1.bf16.msra.mxu0 %v497
    %679 = vmatprep.subr.bf16.mxu0 0
    %680 = vmatpush1.bf16.msra.mxu0 %v498
    %681 = vmatprep.subr.bf16.mxu0 0
    %682 = vmatpush1.bf16.msra.mxu0 %v499
    %683 = vmatprep.subr.bf16.mxu0 0
    %684 = vmatpush1.bf16.msra.mxu0 %v500
    %685 = vmatprep.subr.bf16.mxu0 0
    %686 = vmatpush1.bf16.msra.mxu0 %v501
    %687 = vmatprep.subr.bf16.mxu0 0
    %688 = vmatpush1.bf16.msra.mxu0 %v502
    %689 = vmatprep.subr.bf16.mxu0 0
    %690 = vmatpush1.bf16.msra.mxu0 %v503
    %691 = vmatprep.subr.bf16.mxu0 0
    %692 = vmatpush1.bf16.msra.mxu0 %v504
    %693 = vmatprep.subr.bf16.mxu0 0
    %694 = vmatpush1.bf16.msra.mxu0 %v505
    %695 = vmatprep.subr.bf16.mxu0 0
    %696 = vmatpush1.bf16.msra.mxu0 %v506
    %697 = vmatprep.subr.bf16.mxu0 0
    %698 = vmatpush1.bf16.msra.mxu0 %v507
    %699 = vmatprep.subr.bf16.mxu0 0
    %700 = vmatpush1.bf16.msra.mxu0 %v508
    %701 = vmatprep.mubr.bf16.mxu0 %v67
    %702 = vmatmul.mubr.bf16.gmra.mrb[0].mxu0 %v66
    %v703 = vpop.f32.mrb[0].mxu0
    %v704 = vadd.f32 %v664, %v703
    %v705 = vpop.f32.mrb[0].mxu0
    %v706 = vpop.f32.mrb[0].mxu0
    %v707 = vpop.f32.mrb[0].mxu0
    %708 = vdwg.mxu0
    %709 = vmatprep.subr.bf16.mxu0 0
    %710 = vmatpush1.bf16.msra.mxu0 %v509
    %711 = vmatprep.subr.bf16.mxu0 0
    %712 = vmatpush1.bf16.msra.mxu0 %v510
    %713 = vmatprep.subr.bf16.mxu0 0
    %714 = vmatpush1.bf16.msra.mxu0 %v511
    %715 = vmatprep.subr.bf16.mxu0 0
    %716 = vmatpush1.bf16.msra.mxu0 %v512
    %717 = vmatprep.subr.bf16.mxu0 0
    %718 = vmatpush1.bf16.msra.mxu0 %v513
    %719 = vmatprep.subr.bf16.mxu0 0
    %720 = vmatpush1.bf16.msra.mxu0 %v514
    %721 = vmatprep.subr.bf16.mxu0 0
    %722 = vmatpush1.bf16.msra.mxu0 %v515
    %723 = vmatprep.subr.bf16.mxu0 0
    %724 = vmatpush1.bf16.msra.mxu0 %v516
    %725 = vmatprep.subr.bf16.mxu0 0
    %726 = vmatpush1.bf16.msra.mxu0 %v517
    %727 = vmatprep.subr.bf16.mxu0 0
    %728 = vmatpush1.bf16.msra.mxu0 %v518
    %729 = vmatprep.subr.bf16.mxu0 0
    %730 = vmatpush1.bf16.msra.mxu0 %v519
    %731 = vmatprep.subr.bf16.mxu0 0
    %732 = vmatpush1.bf16.msra.mxu0 %v520
    %733 = vmatprep.subr.bf16.mxu0 0
    %734 = vmatpush1.bf16.msra.mxu0 %v521
    %735 = vmatprep.subr.bf16.mxu0 0
    %736 = vmatpush1.bf16.msra.mxu0 %v522
    %737 = vmatprep.subr.bf16.mxu0 0
    %738 = vmatpush1.bf16.msra.mxu0 %v523
    %739 = vmatprep.subr.bf16.mxu0 0
    %740 = vmatpush1.bf16.msra.mxu0 %v524
    %741 = vmatprep.mubr.bf16.mxu0 %v69
    %742 = vmatmul.mubr.bf16.gmra.mrb[0].mxu0 %v68
    %v743 = vpop.f32.mrb[0].mxu0
    %v744 = vadd.f32 %v704, %v743
    %v745 = vpop.f32.mrb[0].mxu0
    %v746 = vpop.f32.mrb[0].mxu0
    %v747 = vpop.f32.mrb[0].mxu0
    %748 = vdwg.mxu0
    %v749 = vmul.f32 %v744, 0.5
    %v750 = vadd.f32 %v749, 0.0
    %vm751 = vcmp.ge.f32.partialorder %v750, 1.0
    %v752 = vsel %vm751, 1, 0
    %v753 = vcvt.s32.f32 %v752
    %v754 = vadd.f32 %v753, 0.0
    %v755 = vsel %vm751, 0.0, %v750
    %v756 = vmul.f32 %v755, 0.5
    %v757 = vadd.f32 %v756, %v749
    %vm758 = vcmp.ge.f32.partialorder %v757, 1.0
    %v759 = vsel %vm758, 1, 0
    %v760 = vcvt.s32.f32 %v759
    %v761 = vadd.f32 %v754, %v760
    %v762 = vsel %vm758, 0.0, %v757
    %v763 = vmul.f32 %v762, 0.5
    %v764 = vadd.f32 %v763, %v749
    %vm765 = vcmp.ge.f32.partialorder %v764, 1.0
    %v766 = vsel %vm765, 1, 0
    %v767 = vcvt.s32.f32 %v766
    %v768 = vadd.f32 %v761, %v767
    %v769 = vsel %vm765, 0.0, %v764
    %v770 = vmul.f32 %v769, 0.5
    %v771 = vadd.f32 %v770, %v749
    %vm772 = vcmp.ge.f32.partialorder %v771, 1.0
    %v773 = vsel %vm772, 1, 0
    %v774 = vcvt.s32.f32 %v773
    %v775 = vadd.f32 %v768, %v774
    %v776 = vsel %vm772, 0.0, %v771
    %v777 = vmul.f32 %v776, 0.5
    %v778 = vadd.f32 %v777, %v749
    %vm779 = vcmp.ge.f32.partialorder %v778, 1.0
    %v780 = vsel %vm779, 1, 0
    %v781 = vcvt.s32.f32 %v780
    %v782 = vadd.f32 %v775, %v781
    %v783 = vsel %vm779, 0.0, %v778
    %v784 = vmul.f32 %v783, 0.5
    %v785 = vadd.f32 %v784, %v749
    %vm786 = vcmp.ge.f32.partialorder %v785, 1.0
    %v787 = vsel %vm786, 1, 0
    %v788 = vcvt.s32.f32 %v787
    %v789 = vadd.f32 %v782, %v788
    %v790 = vsel %vm786, 0.0, %v785
    %v791 = vmul.f32 %v790, 0.5
    %v792 = vadd.f32 %v791, %v749
    %vm793 = vcmp.ge.f32.partialorder %v792, 1.0
    %v794 = vsel %vm793, 1, 0
    %v795 = vcvt.s32.f32 %v794
    %v796 = vadd.f32 %v789, %v795
    %v797 = vsel %vm793, 0.0, %v792
    %v798 = vmul.f32 %v797, 0.5
    %v799 = vadd.f32 %v798, %v749
    %vm800 = vcmp.ge.f32.partialorder %v799, 1.0
    %v801 = vsel %vm800, 1, 0
    %v802 = vcvt.s32.f32 %v801
    %v803 = vadd.f32 %v796, %v802
    %v804 = vmul.f32 %v803, 0.125
    %vm805 = vcmask 254976
    %806 = vst.msk [vmem:[#allocation2] sm:$0x3] %vm805, %v804
    // Predicated region
    $region14: #{tpu_custom_call.1} parent=1 // pred_check
      _
    $region15: #{tpu_custom_call.1} parent=1 // pred_check_branch
      %808 = sbr.rel (0) target = $region17
    $region16: #{tpu_custom_call.1} parent=1 // pred_region
      %s810 = ssub.s32 32, 32
      %811 = vsyncadd [#allocation3], %s810
      %s813 = sshll.u32 [#allocation2], 4
      %s814 = int_to_ptr.vmem [resolvable:$true] %s813
      %816 = dma.vmem_to_hbm [thread:$0]  %s814, 32, %s3, [#allocation3]
    $region17: #{tpu_custom_call.1} parent=1 // pred_fallthru
      _
    // Predicated region
    $region18: #{tpu_custom_call.1} parent=1 // pred_check
      _
    $region19: #{tpu_custom_call.1} parent=1 // pred_check_branch
      %818 = sbr.rel (0) target = $region21
    $region20: #{tpu_custom_call.1} parent=1 // pred_region
      %819 = dma.done [#allocation3], 32
    $region21: #{tpu_custom_call.1} parent=1 // pred_fallthru
      _
    %820 = vsyncpa [#allocation3], 1

</llo_original>
